<compile_context>
chip_gen: v5e
topology: v5e:2x2
jax: 0.10.0
libtpu: 0.0.40
codegen_flags: <defaults>
</compile_context>

<pallas_src>
import math
import jax
import jax.numpy as jnp
from jax.experimental import pallas as pl
from jax.experimental.pallas import tpu as pltpu

VMEM_LIMIT = 32 * 1024 * 1024  # safe across v5e / v6e / v7x


# ----------------------------------------------------------------------------- #
# Kernel 1: fused  embedding[:, 1:-1, :]  ->  pad rows to max_len  ->  softmax(-1)
# ----------------------------------------------------------------------------- #
def pallas_esm_embedding_softmax(embedding_raw, max_len):
    """RNAESM2 embedding post-processing in one kernel.

    Padded rows of the reference are softmax(all-zero row) == uniform 1/E, so they are
    written directly as constants instead of materializing the padded tensor in HBM.
    """
    B, Lp2, E = embedding_raw.shape
    L = Lp2 - 2
    assert max_len >= L

    def _kernel(x_ref, o_ref):
        x = x_ref[0, 1:1 + L, :].astype(jnp.float32)          # drop BOS / EOS rows
        m = jnp.max(x, axis=-1, keepdims=True)
        e = jnp.exp(x - m)
        s = jnp.sum(e, axis=-1, keepdims=True)
        # Exact division (NOT approx reciprocal): rows must sum to 1 for the conditioner.
        o_ref[0, :L, :] = (e / s).astype(o_ref.dtype)
        if max_len > L:
            # softmax of a zero-padded row is exactly uniform 1/E (matches torch reference).
            o_ref[0, L:, :] = jnp.full((max_len - L, E), 1.0 / E, dtype=o_ref.dtype)

    return pl.pallas_call(
        _kernel,
        out_shape=jax.ShapeDtypeStruct((B, max_len, E), embedding_raw.dtype),
        grid=(B,),
        in_specs=[pl.BlockSpec((1, Lp2, E), lambda b: (b, 0, 0))],
        out_specs=pl.BlockSpec((1, max_len, E), lambda b: (b, 0, 0)),
        compiler_params=pltpu.CompilerParams(
            dimension_semantics=("parallel",),
            vmem_limit_bytes=VMEM_LIMIT,
        ),
    )(embedding_raw)


# ----------------------------------------------------------------------------- #
# Kernel 2: attention reshape + [1:-1, 1:-1] slice + zero-pad in a single pass
# ----------------------------------------------------------------------------- #
def pallas_attention_slice_pad(attention_raw, max_len, max_group=64):
    """attention (B, nl, nh, L+2, L+2) -> (B, nl*nh, max_len, max_len), one HBM round trip."""
    B, nl, nh, Lp2, _ = attention_raw.shape
    L = Lp2 - 2
    assert max_len >= L
    G = B * nl * nh
    a = attention_raw.reshape(G, Lp2, Lp2)          # free reshape (contiguous)
    gt = G if G <= max_group else max_group          # heads per grid step (~3.4 MiB dbl-buffered)

    def _kernel(a_ref, o_ref):
        # zero the whole output block, then overwrite the valid [L, L] corner.
        o_ref[...] = jnp.zeros(o_ref.shape, dtype=o_ref.dtype)
        o_ref[:, :L, :L] = a_ref[:, 1:1 + L, 1:1 + L].astype(o_ref.dtype)

    out = pl.pallas_call(
        _kernel,
        out_shape=jax.ShapeDtypeStruct((G, max_len, max_len), attention_raw.dtype),
        grid=(pl.cdiv(G, gt),),
        in_specs=[pl.BlockSpec((gt, Lp2, Lp2), lambda i: (i, 0, 0))],
        out_specs=pl.BlockSpec((gt, max_len, max_len), lambda i: (i, 0, 0)),
        compiler_params=pltpu.CompilerParams(
            dimension_semantics=("parallel",),
            vmem_limit_bytes=VMEM_LIMIT,
        ),
    )(a)
    return out.reshape(B, nl * nh, max_len, max_len)


# ----------------------------------------------------------------------------- #
# Kernel 3: 1x1 conv == per-pixel matmul over channels (RNAUNet.conv_layer)
#   out(Cout, HW_tile) = W(Cout, Cin) @ X(Cin, HW_tile) + b, directly on the NCHW view.
# ----------------------------------------------------------------------------- #
def pallas_conv1x1(feat_nchw, w_oi, bias, max_tile_hw=8192):
    # feat_nchw: (B, Cin, H, W) ; w_oi: (Cout, Cin) ; bias: (Cout,)
    # Kernel is dtype-agnostic: feed bf16 features/weights (produced upstream) for ~2x on this
    # HBM-bound op; accumulation stays f32 via preferred_element_type.
    B, Cin, H, W = feat_nchw.shape
    Cout = w_oi.shape[0]
    HW = H * W
    x = feat_nchw.reshape(B, Cin, HW)                # free reshape, stays channel-major
    b2 = bias.reshape(Cout, 1).astype(jnp.float32)
    tile_hw = HW if HW <= max_tile_hw else max_tile_hw
    n_j = pl.cdiv(HW, tile_hw)
    grid = (B * n_j,)   # single folded "parallel" axis: balances both v7x TCs for any B

    def _kernel(x_ref, w_ref, b_ref, o_ref):
        acc = jnp.dot(w_ref[...], x_ref[0], preferred_element_type=jnp.float32)
        o_ref[0] = (acc + b_ref[...]).astype(o_ref.dtype)

    out = pl.pallas_call(
        _kernel,
        out_shape=jax.ShapeDtypeStruct((B, Cout, HW), jnp.float32),
        grid=grid,
        in_specs=[
            pl.BlockSpec((1, Cin, tile_hw), lambda g: (g // n_j, 0, g % n_j)),
            pl.BlockSpec((Cout, Cin), lambda g: (0, 0)),
            pl.BlockSpec((Cout, 1), lambda g: (0, 0)),
        ],
        out_specs=pl.BlockSpec((1, Cout, tile_hw), lambda g: (g // n_j, 0, g % n_j)),
        compiler_params=pltpu.CompilerParams(
            dimension_semantics=("parallel",),
            vmem_limit_bytes=VMEM_LIMIT,
        ),
    )(x, w_oi, b2)
    return out.reshape(B, Cout, H, W)


# ----------------------------------------------------------------------------- #
# Kernel 4: bits-per-dim reduction:  -loss.sum() / (log(2) * x_0.numel())
#   Lane-dense (rows, 512) tiling, VPU-only per-step accumulation into an (8, 512) VMEM
#   accumulator, one XLU reduce + SMEM scalar store in the final pl.when.
# ----------------------------------------------------------------------------- #
def pallas_bpd(loss_per_elem, numel, cols=512, max_block_rows=1024):
    scale = 1.0 / (math.log(2) * float(numel))
    max_block_rows = max(8, (max_block_rows // 8) * 8)

    flat = loss_per_elem.reshape(-1).astype(jnp.float32)
    n = flat.shape[0]
    rows_needed = -(-n // cols)
    if rows_needed <= max_block_rows:
        padded_rows = max(8, ((rows_needed + 7) // 8) * 8)
        block_rows = padded_rows
    else:
        block_rows = max_block_rows
        padded_rows = ((rows_needed + block_rows - 1) // block_rows) * block_rows
    pad = padded_rows * cols - n
    if pad:
        flat = jnp.pad(flat, (0, pad))               # zero pad: sum-neutral, no in-kernel mask
    loss2d = flat.reshape(padded_rows, cols)
    grid = (padded_rows // block_rows,)

    def _bpd_kernel(l_ref, o_ref, acc_ref):
        i = pl.program_id(0)

        @pl.when(i == 0)
        def _():
            acc_ref[...] = jnp.zeros_like(acc_ref)

        x = l_ref[...]
        # Leading-dim split is layout-free; summing the (8, cols) slabs is pure VPU adds.
        acc_ref[...] += jnp.sum(x.reshape(block_rows // 8, 8, cols), axis=0)

        @pl.when(i == pl.num_programs(0) - 1)
        def _():
            o_ref[0, 0] = -jnp.sum(acc_ref[...]) * scale

    # TODO(synk): on v7x, a leading size-2 "parallel" grid axis with two partial sums would use
    # both TensorCores; omitted here since this reduction is a tiny fraction of the forward.
    out = pl.pallas_call(
        _bpd_kernel,
        out_shape=jax.ShapeDtypeStruct((1, 1), jnp.float32),
        grid=grid,
        in_specs=[pl.BlockSpec((block_rows, cols), lambda i: (i, 0))],
        out_specs=pl.BlockSpec(memory_space=pltpu.MemorySpace.SMEM),
        scratch_shapes=[pltpu.VMEM((8, cols), jnp.float32)],
        compiler_params=pltpu.CompilerParams(
            dimension_semantics=("arbitrary",),
            vmem_limit_bytes=VMEM_LIMIT,
        ),
    )(loss2d)
    return out[0, 0]


# ----------------------------------------------------------------------------- #
# Module-level wrappers
# ----------------------------------------------------------------------------- #
def esm_conditioner_forward(embedding_raw, attention_raw, max_len):
    """RNAESM2.forward post-processing.

    embedding_raw: (B, L+2, E)               stand-in for infer['representations'][30]
    attention_raw: (B, nl, nh, L+2, L+2)     stand-in for infer['attentions']
    """
    # TODO(synk): the RNA-ESM2 transformer backbone is checkpoint-loaded and not defined in the
    # snippet; embedding_raw / attention_raw stand in for its outputs (tokenization included).
    embedding = pallas_esm_embedding_softmax(embedding_raw, max_len)
    attention = pallas_attention_slice_pad(attention_raw, max_len)
    return {"embedding": embedding, "attention": attention}


def diffusion_rna2d_forward(x_0, unet_features, embedding_raw, attention_raw,
                            loss_per_elem, conv_w, conv_b, max_len):
    # 1) ESM condition
    esm_condition = esm_conditioner_forward(embedding_raw, attention_raw, max_len)

    # 2) UNet condition: final Conv_1x1 (the only layer defined in the snippet).
    # TODO(synk): the UNet backbone (class UNet, checkpoint-loaded) is not defined in the
    # snippet; unet_features stands in for its pre-Conv_1x1 activation of shape (B, 32, H, W).
    unet_condition = pallas_conv1x1(unet_features, conv_w, conv_b)

    # 3) Diffusion loss -> bits-per-dim.
    # TODO(synk): MultinomialDiffusion / SegmentationUnet2DCondition are not defined in the
    # snippet; loss_per_elem stands in for self.diffusion(x_0, esm_condition, unet_condition, ...).
    log_likelihood_bpd = pallas_bpd(loss_per_elem, x_0.size)

    return log_likelihood_bpd, esm_condition, unet_condition


# ----------------------------------------------------------------------------- #
if __name__ == "__main__":
    key = jax.random.PRNGKey(0)
    k1, k2, k3, k4, k5, k6 = jax.random.split(key, 6)

    # Small, module-consistent shapes.
    B = 2           # batch
    L = 6           # raw RNA sequence length
    max_len = 8     # padded length
    E = 32          # ESM embedding dim (hidden)
    n_layers, n_heads = 2, 2
    H = W = 16      # 2D contact-map spatial size for the UNet features
    C_IN = 32       # int(32 * CH_FOLD)
    COND_DIM = 8    # cond_dim
    NUM_CLASSES = 2

    # Stand-ins for external backbone outputs (deterministic).
    embedding_raw = jax.random.normal(k1, (B, L + 2, E), dtype=jnp.float32)
    attention_raw = jax.random.normal(k2, (B, n_layers, n_heads, L + 2, L + 2), dtype=jnp.float32)
    unet_features = jax.random.normal(k3, (B, C_IN, H, W), dtype=jnp.float32)

    # x_0: integer class map (num_classes=2) over the padded 2D contact grid.
    x_0 = jax.random.randint(k5, (B, max_len, max_len), 0, NUM_CLASSES, dtype=jnp.int32)
    # Per-element diffusion loss surrogate (positive), see TODO(synk) above.
    loss_per_elem = jax.nn.softplus(jax.random.normal(k6, (B, max_len, max_len), dtype=jnp.float32))

    # Conv_1x1 parameters, deterministic init matching nn.Conv2d(32, cond_dim, 1) shapes.
    wkey, bkey = jax.random.split(k4)
    bound = 1.0 / math.sqrt(C_IN)
    conv_w = jax.random.uniform(wkey, (COND_DIM, C_IN), jnp.float32, -bound, bound)
    conv_b = jax.random.uniform(bkey, (COND_DIM,), jnp.float32, -bound, bound)

    bpd, esm_cond, unet_cond = diffusion_rna2d_forward(
        x_0, unet_features, embedding_raw, attention_raw, loss_per_elem, conv_w, conv_b, max_len
    )
    jax.block_until_ready((bpd, esm_cond["embedding"], esm_cond["attention"], unet_cond))

    # --- sanity checks against plain-JAX references of the PyTorch semantics ---
    assert esm_cond["embedding"].shape == (B, max_len, E)
    assert esm_cond["attention"].shape == (B, n_layers * n_heads, max_len, max_len)
    assert unet_cond.shape == (B, COND_DIM, H, W)

    emb_pad = jnp.pad(embedding_raw[:, 1:-1, :], ((0, 0), (0, max_len - L), (0, 0)))
    ref_softmax = jax.nn.softmax(emb_pad, axis=-1)
    assert bool(jnp.allclose(jnp.sum(esm_cond["embedding"], axis=-1), 1.0, atol=1e-4))
    assert bool(jnp.allclose(esm_cond["embedding"], ref_softmax, atol=1e-4))

    ref_att = attention_raw.reshape(B, n_layers * n_heads, L + 2, L + 2)[:, :, 1:-1, 1:-1]
    ref_att = jnp.pad(ref_att, ((0, 0), (0, 0), (0, max_len - L), (0, max_len - L)))
    assert bool(jnp.allclose(esm_cond["attention"], ref_att, atol=1e-6))

    ref_conv = (
        jnp.einsum("bchw,oc->bohw", unet_features, conv_w) + conv_b[None, :, None, None]
    )
    assert bool(jnp.allclose(unet_cond, ref_conv, atol=2e-3))

    ref_bpd = -jnp.sum(loss_per_elem) / (math.log(2) * x_0.size)
    assert bool(jnp.allclose(bpd, ref_bpd, atol=1e-4))

    print("KERNEL_OK")
</pallas_src>

<mosaic_0001>
module attributes {stable_mosaic.version = 11 : i64} {
  func.func @_kernel(%arg0: i32, %arg1: memref<1x8x32xf32, #tpu.memory_space<vmem>>, %arg2: memref<1x8x32xf32, #tpu.memory_space<vmem>>) attributes {dimension_semantics = [#tpu.dimension_semantics<parallel>], iteration_bounds = array<i64: 2>, scalar_prefetch = 0 : i64, scratch_operands = 0 : i64, tpu.core_type = #tpu.core_type<tc>, window_params = [{transform_indices = @transform_0, window_bounds = array<i64: 1, 8, 32>}, {transform_indices = @transform_1, window_bounds = array<i64: 1, 8, 32>}]} {
    %c0 = arith.constant 0 : index
    %c1 = arith.constant 1 : index
    %c0_0 = arith.constant 0 : index
    %0 = vector.load %arg1[%c0, %c1, %c0_0] : memref<1x8x32xf32, #tpu.memory_space<vmem>>, vector<1x6x32xf32>
    %1 = vector.shape_cast %0 : vector<1x6x32xf32> to vector<6x32xf32>
    %cst = arith.constant dense<0xFF800000> : vector<6xf32>
    %2 = vector.multi_reduction <maximumf>, %1, %cst [1] : vector<6x32xf32> to vector<6xf32>
    %3 = vector.shape_cast %2 : vector<6xf32> to vector<6x1xf32>
    %4 = vector.broadcast %3 : vector<6x1xf32> to vector<6x32xf32>
    %5 = arith.subf %1, %4 : vector<6x32xf32>
    %6 = math.exp %5 : vector<6x32xf32>
    %cst_1 = arith.constant dense<0.000000e+00> : vector<6xf32>
    %7 = vector.multi_reduction <add>, %6, %cst_1 [1] : vector<6x32xf32> to vector<6xf32>
    %8 = vector.shape_cast %7 : vector<6xf32> to vector<6x1xf32>
    %9 = vector.broadcast %8 : vector<6x1xf32> to vector<6x32xf32>
    %10 = arith.divf %6, %9 : vector<6x32xf32>
    %c0_2 = arith.constant 0 : index
    %c0_3 = arith.constant 0 : index
    %c0_4 = arith.constant 0 : index
    %11 = vector.load %arg2[%c0_2, %c0_3, %c0_4] : memref<1x8x32xf32, #tpu.memory_space<vmem>>, vector<1x6x32xf32>
    %12 = vector.shape_cast %11 : vector<1x6x32xf32> to vector<6x32xf32>
    %13 = vector.shape_cast %10 : vector<6x32xf32> to vector<1x6x32xf32>
    tpu.vector_store %arg2[%c0_2, %c0_3, %c0_4], %13 {strides = array<i32>} : memref<1x8x32xf32, #tpu.memory_space<vmem>>, vector<1x6x32xf32>,
    %cst_5 = arith.constant 3.125000e-02 : f32
    %14 = vector.broadcast %cst_5 : f32 to vector<2x32xf32>
    %c0_6 = arith.constant 0 : index
    %c6 = arith.constant 6 : index
    %c0_7 = arith.constant 0 : index
    %15 = vector.load %arg2[%c0_6, %c6, %c0_7] : memref<1x8x32xf32, #tpu.memory_space<vmem>>, vector<1x2x32xf32>
    %16 = vector.shape_cast %15 : vector<1x2x32xf32> to vector<2x32xf32>
    %17 = vector.shape_cast %14 : vector<2x32xf32> to vector<1x2x32xf32>
    tpu.vector_store %arg2[%c0_6, %c6, %c0_7], %17 {strides = array<i32>} : memref<1x8x32xf32, #tpu.memory_space<vmem>>, vector<1x2x32xf32>,
    return
  }
  func.func @transform_0(%arg0: i32) -> (i32, i32, i32) {
    %c0_i32 = arith.constant 0 : i32
    %c0_i32_0 = arith.constant 0 : i32
    %c0_i32_1 = arith.constant 0 : i32
    return %arg0, %c0_i32, %c0_i32_0 : i32, i32, i32
  }
  func.func @transform_1(%arg0: i32) -> (i32, i32, i32) {
    %c0_i32 = arith.constant 0 : i32
    %c0_i32_0 = arith.constant 0 : i32
    %c0_i32_1 = arith.constant 0 : i32
    return %arg0, %c0_i32, %c0_i32_0 : i32, i32, i32
  }
}

</mosaic_0001>

<llo_original>
// kernel: tpu_custom_call.1
$region0: #{tpu_custom_call.1}
  #allocation0 [shape = 'u32[]', space=smem, size = 0x4, offset = 0x4, fixed_abs, tag = 'smem constant byte address 0x4 - core index']
  #allocation1 [shape = 'u32[72,128]{1,0:T(1,128)}', space=vmem, size = 0x9000, scoped, tag = 'internal scratch']
  %s0 = inlined_call_operand.hbm [shape: f32[2,8,32], index: 0, kind: input, shape index: {}]
  %s1 = inlined_call_operand.hbm [shape: f32[2,8,32], index: 1, kind: output, shape index: {}]
  %s2 = sld [smem:[#allocation0]]
  $region41: #{tpu_custom_call.1} parent=0
    _
  %s4 = ssub.s32 1, %s2
  %s5 = scalar_select 0, %s4, %s2
  $region1: #{tpu_custom_call.1} parent=0
    #allocation2 [shape = 'u8[8192]{0}', space=vmem, size = 0x2000, scoped, tag = 'input window, operand 0']
    #allocation3 [shape = 's32[2]{0}', space=sflag, size = 0x8, scoped, tag = 'scoped memory for tpu_custom_call.1']
    #allocation4 [shape = 's32[2]{0}', space=sflag, size = 0x8, scoped, tag = 'scoped memory for tpu_custom_call.1']
    #allocation5 [shape = 'u8[8192]{0}', space=vmem, size = 0x2000, scoped, tag = 'output window, operand 0']
    %6 = vsyncpa [#allocation3], 0
    %s7 = scalar_lea.sflag [#allocation3], 1
    %8 = vsyncpa %s7, 0
    %9 = vsyncpa [#allocation4], 0
    %s10 = scalar_lea.sflag [#allocation4], 1
    %11 = vsyncpa %s10, 0
    loop: start=0, step=1, limit=4
    $region2: #{tpu_custom_call.1} parent=1 // loop_pre_header
      _
    $region3: #{tpu_custom_call.1} parent=1 // loop_header
      %s13 = sphi 0, %s17
      %p14 = scmp.ge.s32.totalorder %s13, 4
      %s23 = sphi 0, %s25
      %s26 = sphi 0, %s23
      %s27 = sphi 0, %s26
      %s43 = sphi 0, %s27
      %s49 = sphi 0, %s51
      %s52 = sphi 0, %s49
      %s53 = sphi 0, %s52
      %s69 = sphi 0, %s53
    $region4: #{tpu_custom_call.1} parent=1 // loop_header_branch
      %16 = sbr.rel (%p14) target = $region8
    $region5: #{tpu_custom_call.1} parent=1 // loop_body
      %s18 = ssub.s32 %s13, 1
      %s19 = ssub.s32 %s13, 2
      %s20 = sadd.s32 %s13, 1
      %s21 = ssub.s32 %s13, %s20
      %p22 = scmp.eq.s32.totalorder %s21, 0
      %s24 = sadd.s32 %s23, 1
      %s25 = scalar_select %p22, %s23, %s24
      %p28 = pneg %p22
      %p29 = scmp.eq.s32.totalorder %s13, 1
      %p30 = por %p28, %p29
      %p31 = scmp.ne.s32.totalorder %s23, %s26
      %p32 = scmp.eq.s32.totalorder %s13, 0
      %p33 = por %p31, %p32
      %p34 = scmp.ne.s32.totalorder %s23, %s26
      %p35 = scmp.eq.s32.totalorder %s18, 1
      %p36 = por %p34, %p35
      %p37 = scmp.ne.s32.totalorder %s26, %s27
      %p38 = scmp.eq.s32.totalorder %s18, 0
      %p39 = por %p37, %p38
      %p40 = scmp.ne.s32.totalorder %s26, %s27
      %p41 = scmp.eq.s32.totalorder %s19, 1
      %p42 = por %p40, %p41
      %p44 = scmp.ne.s32.totalorder %s27, %s43
      %p45 = scmp.eq.s32.totalorder %s19, 0
      %p46 = por %p44, %p45
      %s47 = ssub.s32 %s13, %s20
      %p48 = scmp.eq.s32.totalorder %s47, 0
      %s50 = sadd.s32 %s49, 1
      %s51 = scalar_select %p48, %s49, %s50
      %p54 = pneg %p48
      %p55 = scmp.eq.s32.totalorder %s13, 1
      %p56 = por %p54, %p55
      %p57 = scmp.ne.s32.totalorder %s49, %s52
      %p58 = scmp.eq.s32.totalorder %s13, 0
      %p59 = por %p57, %p58
      %p60 = scmp.ne.s32.totalorder %s49, %s52
      %p61 = scmp.eq.s32.totalorder %s18, 1
      %p62 = por %p60, %p61
      %p63 = scmp.ne.s32.totalorder %s52, %s53
      %p64 = scmp.eq.s32.totalorder %s18, 0
      %p65 = por %p63, %p64
      %p66 = scmp.ne.s32.totalorder %s52, %s53
      %p67 = scmp.eq.s32.totalorder %s19, 1
      %p68 = por %p66, %p67
      %p70 = scmp.ne.s32.totalorder %s53, %s69
      %p71 = scmp.eq.s32.totalorder %s19, 0
      %p72 = por %p70, %p71
      %p73 = scmp.le.s32.totalorder 1, %s13
      %p74 = scmp.lt.s32.totalorder %s13, 3
      %p75 = pnand %p73, %p74
      %p76 = pneg %p75
      // Predicated region
      $region9: #{tpu_custom_call.1} parent=5 // pred_check
        _
      $region10: #{tpu_custom_call.1} parent=5 // pred_check_branch
        %78 = sbr.rel (%p75) target = $region12
      $region11: #{tpu_custom_call.1} parent=5 // pred_region
        %s79 = ssub.s32 %s13, 1
      $region12: #{tpu_custom_call.1} parent=5 // pred_fallthru
        _
      %p80 = scmp.lt.s32.totalorder %s13, 2
      // Predicated region
      $region13: #{tpu_custom_call.1} parent=5 // pred_check
        %p81 = pneg %p80
      $region14: #{tpu_custom_call.1} parent=5 // pred_check_branch
        %83 = sbr.rel (%p81) target = $region16
      $region15: #{tpu_custom_call.1} parent=5 // pred_region
        // Predicated region
        $region17: #{tpu_custom_call.1} parent=15 // pred_check
          %p84 = pneg %p33
        $region18: #{tpu_custom_call.1} parent=15 // pred_check_branch
          %86 = sbr.rel (%p84) target = $region20
        $region19: #{tpu_custom_call.1} parent=15 // pred_region
          %s87 = sand.u32 %s23, 1
          %s88 = scalar_lea.sflag [#allocation3], %s87
          %s89 = sand.u32 %s23, 1
          %s90 = smul.addr %s89, 8
          %s91 = scalar_lea.vmem [#allocation2], %s90
          %93 = vsyncadd %s88, 0
          %s94 = smul.addr %s13, 8
          %s95 = scalar_lea.hbm %s0, %s94
          %s97 = sshll.u32 %s95, 4
          %s98 = int_to_ptr.hbm [resolvable:$true] %s97
          %s99 = sshll.u32 %s91, 4
          %s100 = int_to_ptr.vmem [resolvable:$true] %s99
          %102 = dma.hbm_to_vmem [thread:$0]  %s98, 128, %s100, %s88
        $region20: #{tpu_custom_call.1} parent=15 // pred_fallthru
          _
      $region16: #{tpu_custom_call.1} parent=5 // pred_fallthru
        _
      %p103 = scmp.le.s32.totalorder 1, %s13
      %p104 = scmp.lt.s32.totalorder %s13, 3
      %p105 = pnand %p103, %p104
      %p106 = pneg %p105
      // Predicated region
      $region21: #{tpu_custom_call.1} parent=5 // pred_check
        _
      $region22: #{tpu_custom_call.1} parent=5 // pred_check_branch
        %108 = sbr.rel (%p105) target = $region24
      $region23: #{tpu_custom_call.1} parent=5 // pred_region
        %s109 = ssub.s32 %s13, 1
        %s110 = sand.u32 %s26, 1
        %s111 = scalar_lea.sflag [#allocation3], %s110
        %s112 = sand.u32 %s26, 1
        %s113 = smul.addr %s112, 8
        %s114 = scalar_lea.vmem [#allocation2], %s113
        // Predicated region
        $region25: #{tpu_custom_call.1} parent=23 // pred_check
          %p115 = pneg %p39
        $region26: #{tpu_custom_call.1} parent=23 // pred_check_branch
          %117 = sbr.rel (%p115) target = $region28
        $region27: #{tpu_custom_call.1} parent=23 // pred_region
          %119 = dma.done %s111, 128
        $region28: #{tpu_custom_call.1} parent=23 // pred_fallthru
          _
        %s120 = sand.u32 %s26, 1
        %s121 = scalar_lea.sflag [#allocation3], %s120
        %s122 = sand.u32 %s26, 1
        %s123 = smul.addr %s122, 8
        %s124 = scalar_lea.vmem [#allocation2], %s123
        %p125 = pneg %p39
        %p126 = pneg %p36
        %p127 = pneg %p65
        %p128 = pneg %p62
        %s129 = sand.u32 %s52, 1
        %s130 = scalar_lea.sflag [#allocation4], %s129
        %s131 = sand.u32 %s52, 1
        %s132 = smul.addr %s131, 8
        %s133 = scalar_lea.vmem [#allocation5], %s132
        %v134 = vld [vmem:[%s114 + $0x1] sm:$0x3f]
        %vm135 = vcmask 259072
        %v136 = vsel %vm135, %v134, -inf
        %137 = vmax.xlane.f32.xlu0 %v136
        %v138 = vpop.xlane.xlu0 %137
        %v139 = vsub.f32 %v134, %v138
        %v140 = vmul.f32 %v139, 1.442695
        %v141 = vpow.pop %v140
        %v142 = vsel %vm135, %v141, 0.0
        %143 = vadd.xlane.f32.xlu0 %v142
        %v144 = vpop.xlane.xlu0 %143
        %v145 = vrcp.pop %v144
        %v146 = vmul.f32 %v144, %v145
        %v147 = vsub.f32 1.0, %v146
        %v148 = vmul.f32 %v145, %v147
        %v149 = vadd.f32 %v145, %v148
        %vm150 = vweird.f32 %v144
        %vm151 = vweird.f32 %v145
        %vm152 = vmor %vm150, %vm151
        %v153 = vsel %vm152, %v145, %v149
        %v154 = vand.u32 2147483647, %v144
        %vm155 = vcmp.eq.f32.partialorder %v154, 8.507059e+37
        %v156 = vand.u32 %v144, 2147483648
        %v157 = vor.u32 1.1754944e-38, %v156
        %v158 = vsel %vm155, %v157, %v153
        %v159 = vmul.f32 %v141, %v158
        %160 = vst.msk [vmem:[%s133] sm:$0x3f] %vm135, %v159
        %vm161 = vcmask 254976
        %162 = vst.msk [vmem:[%s133 + $0x6] sm:$0x3] %vm161, 0.03125
        %s163 = sand.u32 %s52, 1
        %s164 = scalar_lea.sflag [#allocation4], %s163
        %s165 = sand.u32 %s52, 1
        %s166 = smul.addr %s165, 8
        %s167 = scalar_lea.vmem [#allocation5], %s166
        // Predicated region
        $region29: #{tpu_custom_call.1} parent=23 // pred_check
          %p168 = pneg %p62
        $region30: #{tpu_custom_call.1} parent=23 // pred_check_branch
          %170 = sbr.rel (%p168) target = $region32
        $region31: #{tpu_custom_call.1} parent=23 // pred_region
          %172 = vsyncadd %s164, 0
          %s173 = smul.addr %s18, 8
          %s174 = scalar_lea.hbm %s1, %s173
          %s176 = sshll.u32 %s167, 4
          %s177 = int_to_ptr.vmem [resolvable:$true] %s176
          %s178 = sshll.u32 %s174, 4
          %s179 = int_to_ptr.hbm [resolvable:$true] %s178
          %181 = dma.vmem_to_hbm [thread:$0]  %s177, 128, %s179, %s164
        $region32: #{tpu_custom_call.1} parent=23 // pred_fallthru
          _
      $region24: #{tpu_custom_call.1} parent=5 // pred_fallthru
        _
      %p182 = scmp.le.s32.totalorder 2, %s13
      // Predicated region
      $region33: #{tpu_custom_call.1} parent=5 // pred_check
        %p183 = pneg %p182
      $region34: #{tpu_custom_call.1} parent=5 // pred_check_branch
        %185 = sbr.rel (%p183) target = $region36
      $region35: #{tpu_custom_call.1} parent=5 // pred_region
        %s186 = ssub.s32 %s13, 2
        // Predicated region
        $region37: #{tpu_custom_call.1} parent=35 // pred_check
          %p187 = pneg %p68
        $region38: #{tpu_custom_call.1} parent=35 // pred_check_branch
          %189 = sbr.rel (%p187) target = $region40
        $region39: #{tpu_custom_call.1} parent=35 // pred_region
          %s190 = sand.u32 %s53, 1
          %s191 = scalar_lea.sflag [#allocation4], %s190
          %s192 = sand.u32 %s53, 1
          %s193 = smul.addr %s192, 8
          %s194 = scalar_lea.vmem [#allocation5], %s193
          %196 = dma.done %s191, 128
        $region40: #{tpu_custom_call.1} parent=35 // pred_fallthru
          _
      $region36: #{tpu_custom_call.1} parent=5 // pred_fallthru
        _
    $region6: #{tpu_custom_call.1} parent=1 // loop_footer
      %s17 = sadd.s32 1, %s13
    $region7: #{tpu_custom_call.1} parent=1 // loop_footer_branch
      %12 = sbr.rel target = $region3
    $region8: #{tpu_custom_call.1} parent=1 // loop_exit
      _
    %197 = vsyncpa [#allocation3], 1
    %s198 = scalar_lea.sflag [#allocation3], 1
    %199 = vsyncpa %s198, 1
    %200 = vsyncpa [#allocation4], 1
    %s201 = scalar_lea.sflag [#allocation4], 1
    %202 = vsyncpa %s201, 1

</llo_original>
